<compile_context>
chip_gen: v6e
topology: v6e:2x2x1
jax: 0.10.0
libtpu: 0.0.40
codegen_flags: <defaults>
</compile_context>

<pallas_src>
import jax
import jax.numpy as jnp
from jax import lax
from jax.experimental import pallas as pl
from jax.experimental.pallas import tpu as pltpu


def _hardswish(x):
    # PyTorch nn.Hardswish: x * relu6(x + 3) / 6
    return x * jnp.clip(x + 3.0, 0.0, 6.0) * (1.0 / 6.0)


def _round_up(x, m):
    return (x + m - 1) // m * m


def critic_mlp_kernel(x_ref,
                      w1_ref, b1_ref,
                      w2_ref, b2_ref,
                      w3_ref, b3_ref,
                      w4t_ref, b4_ref,
                      o_ref):
    # f32 state tile cast to bf16 on the VPU (no separate wrapper cast pass).
    x = x_ref[...].astype(jnp.bfloat16)

    # Layer 1: Linear + ReLU (bf16 MXU operands, f32 accumulation, f32 epilogue)
    h = jnp.dot(x, w1_ref[...], preferred_element_type=jnp.float32) + b1_ref[...]
    h = jnp.maximum(h, 0.0)

    # Layer 2: Linear + ReLU
    h = jnp.dot(h.astype(jnp.bfloat16), w2_ref[...],
                preferred_element_type=jnp.float32) + b2_ref[...]
    h = jnp.maximum(h, 0.0)

    # Layer 3: Linear + Hardswish
    h = jnp.dot(h.astype(jnp.bfloat16), w3_ref[...],
                preferred_element_type=jnp.float32) + b3_ref[...]
    h = _hardswish(h)

    # Layer 4 (value head) on transposed activations:
    #   (8, mid) @ (bt, mid)^T -> (8, bt), batch in the lane axis.
    # Only row 0 of w4t holds real weights; rows 1..7 are zero sublane padding
    # so the output stays a clean lane-dense (8, bt) tile.
    out_t = lax.dot_general(
        w4t_ref[...], h.astype(jnp.bfloat16),
        dimension_numbers=(((1,), (1,)), ((), ())),
        preferred_element_type=jnp.float32)
    o_ref[...] = (out_t + b4_ref[0, 0]).astype(o_ref.dtype)


def prepare_params(params, compute_dtype=jnp.bfloat16):
    """One-time conversion of f32 params to the kernel's layout/dtype.

    params: [(w1,b1),(w2,b2),(w3,b3),(w4,b4)] with w_i (in,out), b_i (1,out).
    """
    (w1, b1), (w2, b2), (w3, b3), (w4, b4) = params
    mid_dim = w4.shape[0]
    # Value head: transpose to (1, mid) and zero-pad to 8 sublanes.
    w4t = jnp.zeros((8, mid_dim), compute_dtype).at[0, :].set(
        w4[:, 0].astype(compute_dtype))
    return dict(
        w1=w1.astype(compute_dtype), b1=b1.astype(jnp.float32),
        w2=w2.astype(compute_dtype), b2=b2.astype(jnp.float32),
        w3=w3.astype(compute_dtype), b3=b3.astype(jnp.float32),
        w4t=w4t, b4=b4.reshape(1, 1).astype(jnp.float32),
    )


def critic_adv_forward(state, prepared, *, batch_tile=1024):
    """Fused Pallas forward pass. state: (B, state_dim) f32 -> (B, 1) f32."""
    B, state_dim = state.shape
    assert prepared["w1"].shape[0] == state_dim

    # Batch tile: multiple of 128, large (amortize ~0.35us grid-step overhead),
    # but capped so moderate batches still give a >=2-step grid (v7x: 2 TCs).
    bt = min(_round_up(batch_tile, 128),
             max(128, _round_up(pl.cdiv(B, 2), 128)))
    grid = (pl.cdiv(B, bt),)

    def bcast(arr):
        # Full-array block, same block every grid step (weights / biases).
        # pl.Buffered(1) here would halve weight VMEM residency; irrelevant
        # at mid_dim=128, revisit for large mid_dim on v7x.
        return pl.BlockSpec(arr.shape, lambda i: (0, 0))

    out = pl.pallas_call(
        critic_mlp_kernel,
        out_shape=jax.ShapeDtypeStruct((8, B), jnp.float32),
        grid_spec=pltpu.PrefetchScalarGridSpec(
            num_scalar_prefetch=0,
            grid=grid,
            in_specs=[
                pl.BlockSpec((bt, state_dim), lambda i: (i, 0)),   # f32 state tile
                bcast(prepared["w1"]), bcast(prepared["b1"]),
                bcast(prepared["w2"]), bcast(prepared["b2"]),
                bcast(prepared["w3"]), bcast(prepared["b3"]),
                bcast(prepared["w4t"]),
                pl.BlockSpec(memory_space=pltpu.MemorySpace.SMEM),  # b4 scalar
            ],
            out_specs=pl.BlockSpec((8, bt), lambda i: (0, i)),
        ),
        compiler_params=pltpu.CompilerParams(
            dimension_semantics=("parallel",)),
    )(state,
      prepared["w1"], prepared["b1"],
      prepared["w2"], prepared["b2"],
      prepared["w3"], prepared["b3"],
      prepared["w4t"], prepared["b4"])

    # Row 0 holds the value head; rows 1..7 are the sublane padding.
    return out[0, :B].reshape(B, 1)


def init_params(key, state_dim, mid_dim):
    """Deterministic synthetic init (uniform, PyTorch-Linear-default-like scaling)."""
    dims = [(state_dim, mid_dim), (mid_dim, mid_dim),
            (mid_dim, mid_dim), (mid_dim, 1)]
    params = []
    for (din, dout) in dims:
        key, kw, kb = jax.random.split(key, 3)
        bound = 1.0 / jnp.sqrt(jnp.float32(din))
        w = jax.random.uniform(kw, (din, dout), jnp.float32, -bound, bound)
        b = jax.random.uniform(kb, (1, dout), jnp.float32, -bound, bound)
        params.append((w, b))
    return params


def reference_forward(state, params, compute_dtype=jnp.float32):
    """Pure-JAX reference. compute_dtype=bf16 mirrors the kernel's MXU-operand cast."""
    def lin(x, w, b):
        return jnp.dot(x.astype(compute_dtype), w.astype(compute_dtype),
                       preferred_element_type=jnp.float32) + b
    (w1, b1), (w2, b2), (w3, b3), (w4, b4) = params
    h = jnp.maximum(lin(state, w1, b1), 0.0)
    h = jnp.maximum(lin(h, w2, b2), 0.0)
    h = _hardswish(lin(h, w3, b3))
    return lin(h, w4, b4)


if __name__ == "__main__":
    # state_dim=64, mid_dim=128, B=200: B deliberately not a multiple of 128 so
    # the grid has 2 steps (feeds both v7x cores) and the last tile is ragged
    # (Pallas-masked reads/writes).
    B, state_dim, mid_dim = 200, 64, 128

    key = jax.random.PRNGKey(0)
    key, kx = jax.random.split(key)
    state = jax.random.normal(kx, (B, state_dim), jnp.float32)
    params = init_params(key, state_dim, mid_dim)
    prepared = prepare_params(params)   # one-time layout/bf16 conversion

    value = critic_adv_forward(state, prepared)
    value = jax.block_until_ready(value)
    assert value.shape == (B, 1)

    # Tight check vs a reference mirroring the bf16-operand / f32-accumulate path.
    ref_bf16 = reference_forward(state, params, compute_dtype=jnp.bfloat16)
    assert jnp.allclose(value, ref_bf16, atol=5e-3, rtol=5e-3), "mismatch vs bf16 reference"

    # Loose check vs the full-f32 PyTorch-equivalent math.
    ref_f32 = reference_forward(state, params, compute_dtype=jnp.float32)
    assert jnp.allclose(value, ref_f32, atol=5e-2, rtol=5e-2), "mismatch vs f32 reference"

    print("KERNEL_OK")
</pallas_src>

<mosaic_0001>
module attributes {stable_mosaic.version = 11 : i64} {
  func.func @critic_mlp_kernel(%arg0: i32, %arg1: memref<128x64xf32, #tpu.memory_space<vmem>>, %arg2: memref<64x128xbf16, #tpu.memory_space<vmem>>, %arg3: memref<1x128xf32, #tpu.memory_space<vmem>>, %arg4: memref<128x128xbf16, #tpu.memory_space<vmem>>, %arg5: memref<1x128xf32, #tpu.memory_space<vmem>>, %arg6: memref<128x128xbf16, #tpu.memory_space<vmem>>, %arg7: memref<1x128xf32, #tpu.memory_space<vmem>>, %arg8: memref<8x128xbf16, #tpu.memory_space<vmem>>, %arg9: memref<1x1xf32, #tpu.memory_space<smem>>, %arg10: memref<8x128xf32, #tpu.memory_space<vmem>>) attributes {dimension_semantics = [#tpu.dimension_semantics<parallel>], iteration_bounds = array<i64: 2>, scalar_prefetch = 0 : i64, scratch_operands = 0 : i64, tpu.core_type = #tpu.core_type<tc>, window_params = [{transform_indices = @transform_0, window_bounds = array<i64: 128, 64>}, {pipeline_mode = #tpu.pipeline_mode<synchronous>, transform_indices = @transform_1, window_bounds = array<i64: 64, 128>}, {pipeline_mode = #tpu.pipeline_mode<synchronous>, transform_indices = @transform_2, window_bounds = array<i64: 1, 128>}, {pipeline_mode = #tpu.pipeline_mode<synchronous>, transform_indices = @transform_3, window_bounds = array<i64: 128, 128>}, {pipeline_mode = #tpu.pipeline_mode<synchronous>, transform_indices = @transform_4, window_bounds = array<i64: 1, 128>}, {pipeline_mode = #tpu.pipeline_mode<synchronous>, transform_indices = @transform_5, window_bounds = array<i64: 128, 128>}, {pipeline_mode = #tpu.pipeline_mode<synchronous>, transform_indices = @transform_6, window_bounds = array<i64: 1, 128>}, {pipeline_mode = #tpu.pipeline_mode<synchronous>, transform_indices = @transform_7, window_bounds = array<i64: 8, 128>}, {transform_indices = @transform_8, window_bounds = array<i64: 1, 1>}, {transform_indices = @transform_9, window_bounds = array<i64: 8, 128>}]} {
    %c0 = arith.constant 0 : index
    %c0_0 = arith.constant 0 : index
    %0 = vector.load %arg1[%c0, %c0_0] : memref<128x64xf32, #tpu.memory_space<vmem>>, vector<128x64xf32>
    %1 = arith.truncf %0 : vector<128x64xf32> to vector<128x64xbf16>
    %c0_1 = arith.constant 0 : index
    %c0_2 = arith.constant 0 : index
    %2 = vector.load %arg2[%c0_1, %c0_2] : memref<64x128xbf16, #tpu.memory_space<vmem>>, vector<64x128xbf16>
    %cst = arith.constant dense<0.000000e+00> : vector<128x128xf32>
    %3 = tpu.matmul %1, %2, %cst {dimension_numbers = #tpu.dot_dimension_numbers<[1], [0], [0], [1], [0, 0, 1, 1], [], []>} : vector<128x64xbf16>, vector<64x128xbf16>, vector<128x128xf32> -> vector<128x128xf32>
    %c0_3 = arith.constant 0 : index
    %c0_4 = arith.constant 0 : index
    %4 = vector.load %arg3[%c0_3, %c0_4] : memref<1x128xf32, #tpu.memory_space<vmem>>, vector<1x128xf32>
    %5 = vector.broadcast %4 : vector<1x128xf32> to vector<128x128xf32>
    %6 = arith.addf %3, %5 : vector<128x128xf32>
    %cst_5 = arith.constant 0.000000e+00 : f32
    %7 = vector.broadcast %cst_5 : f32 to vector<128x128xf32>
    %8 = arith.maximumf %6, %7 : vector<128x128xf32>
    %9 = arith.truncf %8 : vector<128x128xf32> to vector<128x128xbf16>
    %c0_6 = arith.constant 0 : index
    %c0_7 = arith.constant 0 : index
    %10 = vector.load %arg4[%c0_6, %c0_7] : memref<128x128xbf16, #tpu.memory_space<vmem>>, vector<128x128xbf16>
    %cst_8 = arith.constant dense<0.000000e+00> : vector<128x128xf32>
    %11 = tpu.matmul %9, %10, %cst_8 {dimension_numbers = #tpu.dot_dimension_numbers<[1], [0], [0], [1], [0, 0, 1, 1], [], []>} : vector<128x128xbf16>, vector<128x128xbf16>, vector<128x128xf32> -> vector<128x128xf32>
    %c0_9 = arith.constant 0 : index
    %c0_10 = arith.constant 0 : index
    %12 = vector.load %arg5[%c0_9, %c0_10] : memref<1x128xf32, #tpu.memory_space<vmem>>, vector<1x128xf32>
    %13 = vector.broadcast %12 : vector<1x128xf32> to vector<128x128xf32>
    %14 = arith.addf %11, %13 : vector<128x128xf32>
    %cst_11 = arith.constant 0.000000e+00 : f32
    %15 = vector.broadcast %cst_11 : f32 to vector<128x128xf32>
    %16 = arith.maximumf %14, %15 : vector<128x128xf32>
    %17 = arith.truncf %16 : vector<128x128xf32> to vector<128x128xbf16>
    %c0_12 = arith.constant 0 : index
    %c0_13 = arith.constant 0 : index
    %18 = vector.load %arg6[%c0_12, %c0_13] : memref<128x128xbf16, #tpu.memory_space<vmem>>, vector<128x128xbf16>
    %cst_14 = arith.constant dense<0.000000e+00> : vector<128x128xf32>
    %19 = tpu.matmul %17, %18, %cst_14 {dimension_numbers = #tpu.dot_dimension_numbers<[1], [0], [0], [1], [0, 0, 1, 1], [], []>} : vector<128x128xbf16>, vector<128x128xbf16>, vector<128x128xf32> -> vector<128x128xf32>
    %c0_15 = arith.constant 0 : index
    %c0_16 = arith.constant 0 : index
    %20 = vector.load %arg7[%c0_15, %c0_16] : memref<1x128xf32, #tpu.memory_space<vmem>>, vector<1x128xf32>
    %21 = vector.broadcast %20 : vector<1x128xf32> to vector<128x128xf32>
    %22 = arith.addf %19, %21 : vector<128x128xf32>
    %cst_17 = arith.constant 3.000000e+00 : f32
    %23 = vector.broadcast %cst_17 : f32 to vector<128x128xf32>
    %24 = arith.addf %22, %23 : vector<128x128xf32>
    %cst_18 = arith.constant 0.000000e+00 : f32
    %cst_19 = arith.constant 6.000000e+00 : f32
    %25 = vector.broadcast %cst_18 : f32 to vector<128x128xf32>
    %26 = arith.maximumf %25, %24 : vector<128x128xf32>
    %27 = vector.broadcast %cst_19 : f32 to vector<128x128xf32>
    %28 = arith.minimumf %27, %26 : vector<128x128xf32>
    %29 = arith.mulf %22, %28 : vector<128x128xf32>
    %cst_20 = arith.constant 0.166666672 : f32
    %30 = vector.broadcast %cst_20 : f32 to vector<128x128xf32>
    %31 = arith.mulf %29, %30 : vector<128x128xf32>
    %c0_21 = arith.constant 0 : index
    %c0_22 = arith.constant 0 : index
    %32 = vector.load %arg8[%c0_21, %c0_22] : memref<8x128xbf16, #tpu.memory_space<vmem>>, vector<8x128xbf16>
    %33 = arith.truncf %31 : vector<128x128xf32> to vector<128x128xbf16>
    %cst_23 = arith.constant dense<0.000000e+00> : vector<8x128xf32>
    %34 = tpu.matmul %32, %33, %cst_23 {dimension_numbers = #tpu.dot_dimension_numbers<[1], [1], [0], [0], [0, 0, 1, 0], [], []>} : vector<8x128xbf16>, vector<128x128xbf16>, vector<8x128xf32> -> vector<8x128xf32>
    %c0_24 = arith.constant 0 : index
    %c0_25 = arith.constant 0 : index
    %35 = memref.load %arg9[%c0_24, %c0_25] : memref<1x1xf32, #tpu.memory_space<smem>>
    %36 = vector.broadcast %35 : f32 to vector<8x128xf32>
    %37 = arith.addf %34, %36 : vector<8x128xf32>
    %c0_26 = arith.constant 0 : index
    %c0_27 = arith.constant 0 : index
    %38 = vector.load %arg10[%c0_26, %c0_27] : memref<8x128xf32, #tpu.memory_space<vmem>>, vector<8x128xf32>
    tpu.vector_store %arg10[%c0_26, %c0_27], %37 {strides = array<i32>} : memref<8x128xf32, #tpu.memory_space<vmem>>, vector<8x128xf32>,
    return
  }
  func.func @transform_0(%arg0: i32) -> (i32, i32) {
    %c0_i32 = arith.constant 0 : i32
    %c0_i32_0 = arith.constant 0 : i32
    return %arg0, %c0_i32 : i32, i32
  }
  func.func @transform_1(%arg0: i32) -> (i32, i32) {
    %c0_i32 = arith.constant 0 : i32
    %c0_i32_0 = arith.constant 0 : i32
    %c0_i32_1 = arith.constant 0 : i32
    return %c0_i32, %c0_i32_0 : i32, i32
  }
  func.func @transform_2(%arg0: i32) -> (i32, i32) {
    %c0_i32 = arith.constant 0 : i32
    %c0_i32_0 = arith.constant 0 : i32
    %c0_i32_1 = arith.constant 0 : i32
    return %c0_i32, %c0_i32_0 : i32, i32
  }
  func.func @transform_3(%arg0: i32) -> (i32, i32) {
    %c0_i32 = arith.constant 0 : i32
    %c0_i32_0 = arith.constant 0 : i32
    %c0_i32_1 = arith.constant 0 : i32
    return %c0_i32, %c0_i32_0 : i32, i32
  }
  func.func @transform_4(%arg0: i32) -> (i32, i32) {
    %c0_i32 = arith.constant 0 : i32
    %c0_i32_0 = arith.constant 0 : i32
    %c0_i32_1 = arith.constant 0 : i32
    return %c0_i32, %c0_i32_0 : i32, i32
  }
  func.func @transform_5(%arg0: i32) -> (i32, i32) {
    %c0_i32 = arith.constant 0 : i32
    %c0_i32_0 = arith.constant 0 : i32
    %c0_i32_1 = arith.constant 0 : i32
    return %c0_i32, %c0_i32_0 : i32, i32
  }
  func.func @transform_6(%arg0: i32) -> (i32, i32) {
    %c0_i32 = arith.constant 0 : i32
    %c0_i32_0 = arith.constant 0 : i32
    %c0_i32_1 = arith.constant 0 : i32
    return %c0_i32, %c0_i32_0 : i32, i32
  }
  func.func @transform_7(%arg0: i32) -> (i32, i32) {
    %c0_i32 = arith.constant 0 : i32
    %c0_i32_0 = arith.constant 0 : i32
    %c0_i32_1 = arith.constant 0 : i32
    return %c0_i32, %c0_i32_0 : i32, i32
  }
  func.func @transform_8(%arg0: i32) -> (i32, i32) {
    %c0_i32 = arith.constant 0 : i32
    %c0_i32_0 = arith.constant 0 : i32
    %c0_i32_1 = arith.constant 0 : i32
    return %c0_i32, %c0_i32_0 : i32, i32
  }
  func.func @transform_9(%arg0: i32) -> (i32, i32) {
    %c0_i32 = arith.constant 0 : i32
    %c0_i32_0 = arith.constant 0 : i32
    return %c0_i32, %arg0 : i32, i32
  }
}

</mosaic_0001>

<llo_original>
// kernel: tpu_custom_call.1
$region0: #{tpu_custom_call.1}
  #allocation0 [shape = 'u32[]', space=smem, size = 0x4, offset = 0x4, fixed_abs, tag = 'smem constant byte address 0x4 - core index']
  #allocation1 [shape = 'u32[144,128]{1,0:T(1,128)}', space=vmem, size = 0x12000, scoped, tag = 'internal scratch']
  #allocation2 [shape = 'f32[1,1]{1,0:T(1,128)S(6)}', space=smem, size = 0x200, scoped, tag = 'scoped memory for tpu_custom_call.1']
  %s0 = inlined_call_operand.vmem [shape: f32[200,64], index: 0, kind: input, shape index: {}]
  %s1 = inlined_call_operand.vmem [shape: bf16[64,128], index: 1, kind: input, shape index: {}]
  %s2 = inlined_call_operand.vmem [shape: f32[1,128], index: 2, kind: input, shape index: {}]
  %s3 = inlined_call_operand.vmem [shape: bf16[128,128], index: 3, kind: input, shape index: {}]
  %s4 = inlined_call_operand.vmem [shape: f32[1,128], index: 4, kind: input, shape index: {}]
  %s5 = inlined_call_operand.vmem [shape: bf16[128,128], index: 5, kind: input, shape index: {}]
  %s6 = inlined_call_operand.vmem [shape: f32[1,128], index: 6, kind: input, shape index: {}]
  %s7 = inlined_call_operand.vmem [shape: bf16[8,128], index: 7, kind: input, shape index: {}]
  %s8 = inlined_call_operand.<no memory space> [shape: f32[1,1], index: 8, kind: input, shape index: {}]
  %s9 = inlined_call_operand.hbm [shape: f32[8,200], index: 9, kind: output, shape index: {}]
  %s10 = sld [smem:[#allocation0]]
  $region69: #{tpu_custom_call.1} parent=0
    _
  %s12 = ssub.s32 1, %s10
  %s13 = scalar_select 0, %s12, %s10
  %14 = sst [smem:[#allocation2]] %s8
  $region1: #{tpu_custom_call.1} parent=0
    #allocation3 [shape = 'u8[8192]{0}', space=vmem, size = 0x2000, scoped, tag = 'output window, operand 0']
    #allocation4 [shape = 's32[2]{0}', space=sflag, size = 0x8, scoped, tag = 'scoped memory for tpu_custom_call.1']
    %15 = vsyncpa [#allocation4], 0
    %s16 = scalar_lea.sflag [#allocation4], 1
    %17 = vsyncpa %s16, 0
    loop: start=0, step=1, limit=4
    $region2: #{tpu_custom_call.1} parent=1 // loop_pre_header
      _
    $region3: #{tpu_custom_call.1} parent=1 // loop_header
      %s19 = sphi 0, %s23
      %p20 = scmp.ge.s32.totalorder %s19, 4
      %s29 = sphi 0, %s31
      %s32 = sphi 0, %s29
      %s33 = sphi 0, %s32
      %s49 = sphi 0, %s33
      %s53 = sphi 0, %s53
      %s55 = sphi 0, %s53
      %s56 = sphi 0, %s55
      %s70 = sphi 0, %s56
      %s74 = sphi 0, %s74
      %s76 = sphi 0, %s74
      %s77 = sphi 0, %s76
      %s91 = sphi 0, %s77
      %s95 = sphi 0, %s95
      %s97 = sphi 0, %s95
      %s98 = sphi 0, %s97
      %s112 = sphi 0, %s98
      %s116 = sphi 0, %s116
      %s118 = sphi 0, %s116
      %s119 = sphi 0, %s118
      %s133 = sphi 0, %s119
      %s137 = sphi 0, %s137
      %s139 = sphi 0, %s137
      %s140 = sphi 0, %s139
      %s154 = sphi 0, %s140
      %s158 = sphi 0, %s158
      %s160 = sphi 0, %s158
      %s161 = sphi 0, %s160
      %s175 = sphi 0, %s161
      %s179 = sphi 0, %s179
      %s181 = sphi 0, %s179
      %s182 = sphi 0, %s181
      %s196 = sphi 0, %s182
      %s200 = sphi 0, %s200
      %s202 = sphi 0, %s200
      %s203 = sphi 0, %s202
      %s217 = sphi 0, %s203
      %s223 = sphi 0, %s225
      %s226 = sphi 0, %s223
      %s227 = sphi 0, %s226
      %s243 = sphi 0, %s227
    $region4: #{tpu_custom_call.1} parent=1 // loop_header_branch
      %22 = sbr.rel (%p20) target = $region8
    $region5: #{tpu_custom_call.1} parent=1 // loop_body
      %s24 = ssub.s32 %s19, 1
      %s25 = ssub.s32 %s19, 2
      %s26 = sadd.s32 %s19, 1
      %s27 = ssub.s32 %s19, %s26
      %p28 = scmp.eq.s32.totalorder %s27, 0
      %s30 = sadd.s32 %s29, 1
      %s31 = scalar_select %p28, %s29, %s30
      %p34 = pneg %p28
      %p35 = scmp.eq.s32.totalorder %s19, 1
      %p36 = por %p34, %p35
      %p37 = scmp.ne.s32.totalorder %s29, %s32
      %p38 = scmp.eq.s32.totalorder %s19, 0
      %p39 = por %p37, %p38
      %p40 = scmp.ne.s32.totalorder %s29, %s32
      %p41 = scmp.eq.s32.totalorder %s24, 1
      %p42 = por %p40, %p41
      %p43 = scmp.ne.s32.totalorder %s32, %s33
      %p44 = scmp.eq.s32.totalorder %s24, 0
      %p45 = por %p43, %p44
      %p46 = scmp.ne.s32.totalorder %s32, %s33
      %p47 = scmp.eq.s32.totalorder %s25, 1
      %p48 = por %p46, %p47
      %p50 = scmp.ne.s32.totalorder %s33, %s49
      %p51 = scmp.eq.s32.totalorder %s25, 0
      %p52 = por %p50, %p51
      %s54 = sadd.s32 %s53, 1
      %p57 = scmp.eq.s32.totalorder %s19, 1
      %p58 = scmp.ne.s32.totalorder %s53, %s55
      %p59 = scmp.eq.s32.totalorder %s19, 0
      %p60 = por %p58, %p59
      %p61 = scmp.ne.s32.totalorder %s53, %s55
      %p62 = scmp.eq.s32.totalorder %s24, 1
      %p63 = por %p61, %p62
      %p64 = scmp.ne.s32.totalorder %s55, %s56
      %p65 = scmp.eq.s32.totalorder %s24, 0
      %p66 = por %p64, %p65
      %p67 = scmp.ne.s32.totalorder %s55, %s56
      %p68 = scmp.eq.s32.totalorder %s25, 1
      %p69 = por %p67, %p68
      %p71 = scmp.ne.s32.totalorder %s56, %s70
      %p72 = scmp.eq.s32.totalorder %s25, 0
      %p73 = por %p71, %p72
      %s75 = sadd.s32 %s74, 1
      %p78 = scmp.eq.s32.totalorder %s19, 1
      %p79 = scmp.ne.s32.totalorder %s74, %s76
      %p80 = scmp.eq.s32.totalorder %s19, 0
      %p81 = por %p79, %p80
      %p82 = scmp.ne.s32.totalorder %s74, %s76
      %p83 = scmp.eq.s32.totalorder %s24, 1
      %p84 = por %p82, %p83
      %p85 = scmp.ne.s32.totalorder %s76, %s77
      %p86 = scmp.eq.s32.totalorder %s24, 0
      %p87 = por %p85, %p86
      %p88 = scmp.ne.s32.totalorder %s76, %s77
      %p89 = scmp.eq.s32.totalorder %s25, 1
      %p90 = por %p88, %p89
      %p92 = scmp.ne.s32.totalorder %s77, %s91
      %p93 = scmp.eq.s32.totalorder %s25, 0
      %p94 = por %p92, %p93
      %s96 = sadd.s32 %s95, 1
      %p99 = scmp.eq.s32.totalorder %s19, 1
      %p100 = scmp.ne.s32.totalorder %s95, %s97
      %p101 = scmp.eq.s32.totalorder %s19, 0
      %p102 = por %p100, %p101
      %p103 = scmp.ne.s32.totalorder %s95, %s97
      %p104 = scmp.eq.s32.totalorder %s24, 1
      %p105 = por %p103, %p104
      %p106 = scmp.ne.s32.totalorder %s97, %s98
      %p107 = scmp.eq.s32.totalorder %s24, 0
      %p108 = por %p106, %p107
      %p109 = scmp.ne.s32.totalorder %s97, %s98
      %p110 = scmp.eq.s32.totalorder %s25, 1
      %p111 = por %p109, %p110
      %p113 = scmp.ne.s32.totalorder %s98, %s112
      %p114 = scmp.eq.s32.totalorder %s25, 0
      %p115 = por %p113, %p114
      %s117 = sadd.s32 %s116, 1
      %p120 = scmp.eq.s32.totalorder %s19, 1
      %p121 = scmp.ne.s32.totalorder %s116, %s118
      %p122 = scmp.eq.s32.totalorder %s19, 0
      %p123 = por %p121, %p122
      %p124 = scmp.ne.s32.totalorder %s116, %s118
      %p125 = scmp.eq.s32.totalorder %s24, 1
      %p126 = por %p124, %p125
      %p127 = scmp.ne.s32.totalorder %s118, %s119
      %p128 = scmp.eq.s32.totalorder %s24, 0
      %p129 = por %p127, %p128
      %p130 = scmp.ne.s32.totalorder %s118, %s119
      %p131 = scmp.eq.s32.totalorder %s25, 1
      %p132 = por %p130, %p131
      %p134 = scmp.ne.s32.totalorder %s119, %s133
      %p135 = scmp.eq.s32.totalorder %s25, 0
      %p136 = por %p134, %p135
      %s138 = sadd.s32 %s137, 1
      %p141 = scmp.eq.s32.totalorder %s19, 1
      %p142 = scmp.ne.s32.totalorder %s137, %s139
      %p143 = scmp.eq.s32.totalorder %s19, 0
      %p144 = por %p142, %p143
      %p145 = scmp.ne.s32.totalorder %s137, %s139
      %p146 = scmp.eq.s32.totalorder %s24, 1
      %p147 = por %p145, %p146
      %p148 = scmp.ne.s32.totalorder %s139, %s140
      %p149 = scmp.eq.s32.totalorder %s24, 0
      %p150 = por %p148, %p149
      %p151 = scmp.ne.s32.totalorder %s139, %s140
      %p152 = scmp.eq.s32.totalorder %s25, 1
      %p153 = por %p151, %p152
      %p155 = scmp.ne.s32.totalorder %s140, %s154
      %p156 = scmp.eq.s32.totalorder %s25, 0
      %p157 = por %p155, %p156
      %s159 = sadd.s32 %s158, 1
      %p162 = scmp.eq.s32.totalorder %s19, 1
      %p163 = scmp.ne.s32.totalorder %s158, %s160
      %p164 = scmp.eq.s32.totalorder %s19, 0
      %p165 = por %p163, %p164
      %p166 = scmp.ne.s32.totalorder %s158, %s160
      %p167 = scmp.eq.s32.totalorder %s24, 1
      %p168 = por %p166, %p167
      %p169 = scmp.ne.s32.totalorder %s160, %s161
      %p170 = scmp.eq.s32.totalorder %s24, 0
      %p171 = por %p169, %p170
      %p172 = scmp.ne.s32.totalorder %s160, %s161
      %p173 = scmp.eq.s32.totalorder %s25, 1
      %p174 = por %p172, %p173
      %p176 = scmp.ne.s32.totalorder %s161, %s175
      %p177 = scmp.eq.s32.totalorder %s25, 0
      %p178 = por %p176, %p177
      %s180 = sadd.s32 %s179, 1
      %p183 = scmp.eq.s32.totalorder %s19, 1
      %p184 = scmp.ne.s32.totalorder %s179, %s181
      %p185 = scmp.eq.s32.totalorder %s19, 0
      %p186 = por %p184, %p185
      %p187 = scmp.ne.s32.totalorder %s179, %s181
      %p188 = scmp.eq.s32.totalorder %s24, 1
      %p189 = por %p187, %p188
      %p190 = scmp.ne.s32.totalorder %s181, %s182
      %p191 = scmp.eq.s32.totalorder %s24, 0
      %p192 = por %p190, %p191
      %p193 = scmp.ne.s32.totalorder %s181, %s182
      %p194 = scmp.eq.s32.totalorder %s25, 1
      %p195 = por %p193, %p194
      %p197 = scmp.ne.s32.totalorder %s182, %s196
      %p198 = scmp.eq.s32.totalorder %s25, 0
      %p199 = por %p197, %p198
      %s201 = sadd.s32 %s200, 1
      %p204 = scmp.eq.s32.totalorder %s19, 1
      %p205 = scmp.ne.s32.totalorder %s200, %s202
      %p206 = scmp.eq.s32.totalorder %s19, 0
      %p207 = por %p205, %p206
      %p208 = scmp.ne.s32.totalorder %s200, %s202
      %p209 = scmp.eq.s32.totalorder %s24, 1
      %p210 = por %p208, %p209
      %p211 = scmp.ne.s32.totalorder %s202, %s203
      %p212 = scmp.eq.s32.totalorder %s24, 0
      %p213 = por %p211, %p212
      %p214 = scmp.ne.s32.totalorder %s202, %s203
      %p215 = scmp.eq.s32.totalorder %s25, 1
      %p216 = por %p214, %p215
      %p218 = scmp.ne.s32.totalorder %s203, %s217
      %p219 = scmp.eq.s32.totalorder %s25, 0
      %p220 = por %p218, %p219
      %s221 = ssub.s32 %s19, %s26
      %p222 = scmp.eq.s32.totalorder %s221, 0
      %s224 = sadd.s32 %s223, 1
      %s225 = scalar_select %p222, %s223, %s224
      %p228 = pneg %p222
      %p229 = scmp.eq.s32.totalorder %s19, 1
      %p230 = por %p228, %p229
      %p231 = scmp.ne.s32.totalorder %s223, %s226
      %p232 = scmp.eq.s32.totalorder %s19, 0
      %p233 = por %p231, %p232
      %p234 = scmp.ne.s32.totalorder %s223, %s226
      %p235 = scmp.eq.s32.totalorder %s24, 1
      %p236 = por %p234, %p235
      %p237 = scmp.ne.s32.totalorder %s226, %s227
      %p238 = scmp.eq.s32.totalorder %s24, 0
      %p239 = por %p237, %p238
      %p240 = scmp.ne.s32.totalorder %s226, %s227
      %p241 = scmp.eq.s32.totalorder %s25, 1
      %p242 = por %p240, %p241
      %p244 = scmp.ne.s32.totalorder %s227, %s243
      %p245 = scmp.eq.s32.totalorder %s25, 0
      %p246 = por %p244, %p245
      %p247 = scmp.le.s32.totalorder 1, %s19
      %p248 = scmp.lt.s32.totalorder %s19, 3
      %p249 = pnand %p247, %p248
      %p250 = pneg %p249
      // Predicated region
      $region9: #{tpu_custom_call.1} parent=5 // pred_check
        _
      $region10: #{tpu_custom_call.1} parent=5 // pred_check_branch
        %252 = sbr.rel (%p249) target = $region12
      $region11: #{tpu_custom_call.1} parent=5 // pred_region
        %s253 = ssub.s32 %s19, 1
        // Predicated region
        $region13: #{tpu_custom_call.1} parent=11 // pred_check
          %p254 = pneg %p66
        $region14: #{tpu_custom_call.1} parent=11 // pred_check_branch
          %256 = sbr.rel (%p254) target = $region16
        $region15: #{tpu_custom_call.1} parent=11 // pred_region
          _
        $region16: #{tpu_custom_call.1} parent=11 // pred_fallthru
          _
        // Predicated region
        $region17: #{tpu_custom_call.1} parent=11 // pred_check
          %p257 = pneg %p87
        $region18: #{tpu_custom_call.1} parent=11 // pred_check_branch
          %259 = sbr.rel (%p257) target = $region20
        $region19: #{tpu_custom_call.1} parent=11 // pred_region
          _
        $region20: #{tpu_custom_call.1} parent=11 // pred_fallthru
          _
        // Predicated region
        $region21: #{tpu_custom_call.1} parent=11 // pred_check
          %p260 = pneg %p108
        $region22: #{tpu_custom_call.1} parent=11 // pred_check_branch
          %262 = sbr.rel (%p260) target = $region24
        $region23: #{tpu_custom_call.1} parent=11 // pred_region
          _
        $region24: #{tpu_custom_call.1} parent=11 // pred_fallthru
          _
        // Predicated region
        $region25: #{tpu_custom_call.1} parent=11 // pred_check
          %p263 = pneg %p129
        $region26: #{tpu_custom_call.1} parent=11 // pred_check_branch
          %265 = sbr.rel (%p263) target = $region28
        $region27: #{tpu_custom_call.1} parent=11 // pred_region
          _
        $region28: #{tpu_custom_call.1} parent=11 // pred_fallthru
          _
        // Predicated region
        $region29: #{tpu_custom_call.1} parent=11 // pred_check
          %p266 = pneg %p150
        $region30: #{tpu_custom_call.1} parent=11 // pred_check_branch
          %268 = sbr.rel (%p266) target = $region32
        $region31: #{tpu_custom_call.1} parent=11 // pred_region
          _
        $region32: #{tpu_custom_call.1} parent=11 // pred_fallthru
          _
        // Predicated region
        $region33: #{tpu_custom_call.1} parent=11 // pred_check
          %p269 = pneg %p171
        $region34: #{tpu_custom_call.1} parent=11 // pred_check_branch
          %271 = sbr.rel (%p269) target = $region36
        $region35: #{tpu_custom_call.1} parent=11 // pred_region
          _
        $region36: #{tpu_custom_call.1} parent=11 // pred_fallthru
          _
        // Predicated region
        $region37: #{tpu_custom_call.1} parent=11 // pred_check
          %p272 = pneg %p192
        $region38: #{tpu_custom_call.1} parent=11 // pred_check_branch
          %274 = sbr.rel (%p272) target = $region40
        $region39: #{tpu_custom_call.1} parent=11 // pred_region
          _
        $region40: #{tpu_custom_call.1} parent=11 // pred_fallthru
          _
        // Predicated region
        $region41: #{tpu_custom_call.1} parent=11 // pred_check
          %p275 = pneg %p213
        $region42: #{tpu_custom_call.1} parent=11 // pred_check_branch
          %277 = sbr.rel (%p275) target = $region44
        $region43: #{tpu_custom_call.1} parent=11 // pred_region
          _
        $region44: #{tpu_custom_call.1} parent=11 // pred_fallthru
          _
      $region12: #{tpu_custom_call.1} parent=5 // pred_fallthru
        _
      %p278 = scmp.lt.s32.totalorder %s19, 2
      // Predicated region
      $region45: #{tpu_custom_call.1} parent=5 // pred_check
        %p279 = pneg %p278
      $region46: #{tpu_custom_call.1} parent=5 // pred_check_branch
        %281 = sbr.rel (%p279) target = $region48
      $region47: #{tpu_custom_call.1} parent=5 // pred_region
        // Predicated region
        $region49: #{tpu_custom_call.1} parent=47 // pred_check
          %p282 = pneg %p39
        $region50: #{tpu_custom_call.1} parent=47 // pred_check_branch
          %284 = sbr.rel (%p282) target = $region52
        $region51: #{tpu_custom_call.1} parent=47 // pred_region
          %s285 = smul.u32 16, %s19
          %s286 = ssub.s32 25, %s285
          %p287 = scmp.lt.s32.totalorder %s286, 16
          %s288 = scalar_select %p287, %s286, 16
          %s289 = smul.u32 128, %s288
          %p290 = scmp.lt.s32.totalorder %s285, 24
          %s291 = scalar_select %p290, %s285, 24
          %s292 = smul.addr %s291, 8
          %s293 = scalar_lea.vmem %s0, %s292
          %s294 = smul.u32 16, %s19
          %s295 = ssub.s32 25, %s294
          %p296 = scmp.lt.s32.totalorder %s295, 16
          %s297 = scalar_select %p296, %s295, 16
          %s298 = smul.u32 128, %s297
        $region52: #{tpu_custom_call.1} parent=47 // pred_fallthru
          _
      $region48: #{tpu_custom_call.1} parent=5 // pred_fallthru
        _
      %p299 = scmp.le.s32.totalorder 1, %s19
      %p300 = scmp.lt.s32.totalorder %s19, 3
      %p301 = pnand %p299, %p300
      %p302 = pneg %p301
      // Predicated region
      $region53: #{tpu_custom_call.1} parent=5 // pred_check
        _
      $region54: #{tpu_custom_call.1} parent=5 // pred_check_branch
        %304 = sbr.rel (%p301) target = $region56
      $region55: #{tpu_custom_call.1} parent=5 // pred_region
        %s305 = ssub.s32 %s19, 1
        %s306 = smul.u32 16, %s24
        %s307 = ssub.s32 25, %s306
        %p308 = scmp.lt.s32.totalorder %s307, 16
        %s309 = scalar_select %p308, %s307, 16
        %s310 = smul.u32 128, %s309
        %p311 = scmp.lt.s32.totalorder %s306, 24
        %s312 = scalar_select %p311, %s306, 24
        %s313 = smul.addr %s312, 8
        %s314 = scalar_lea.vmem %s0, %s313
        %p315 = pneg %p45
        %p316 = pneg %p42
        %p317 = pneg %p66
        %p318 = pneg %p63
        %p319 = pneg %p87
        %p320 = pneg %p84
        %p321 = pneg %p108
        %p322 = pneg %p105
        %p323 = pneg %p129
        %p324 = pneg %p126
        %p325 = pneg %p150
        %p326 = pneg %p147
        %p327 = pneg %p171
        %p328 = pneg %p168
        %p329 = pneg %p192
        %p330 = pneg %p189
        %p331 = pneg %p213
        %p332 = pneg %p210
        %p333 = pneg %p239
        %p334 = pneg %p236
        %s335 = sand.u32 %s226, 1
        %s336 = scalar_lea.sflag [#allocation4], %s335
        %s337 = sand.u32 %s226, 1
        %s338 = smul.addr %s337, 8
        %s339 = scalar_lea.vmem [#allocation3], %s338
        %s340 = smul.u32 16, %s24
        %s341 = ssub.s32 25, %s340
        %p342 = scmp.lt.s32.totalorder %s341, 16
        %s343 = scalar_select %p342, %s341, 16
        %s344 = smul.u32 128, %s343
        %p345 = scmp.lt.s32.totalorder %s340, 24
        %s346 = scalar_select %p345, %s340, 24
        %s347 = smul.addr %s346, 8
        %s348 = scalar_lea.vmem %s0, %s347
        %s349 = smul.u32 16, %s24
        %s350 = ssub.s32 25, %s349
        %p351 = scmp.lt.s32.totalorder %s350, 16
        %s352 = scalar_select %p351, %s350, 16
        %s353 = smul.u32 128, %s352
        %v355 = vld [vmem:[%s348] sm:$0xff]
        %v356 = vld [vmem:[%s348 + $0x8] sm:$0xff]
        %v357 = vld [vmem:[%s348 + $0x10] sm:$0xff]
        %v358 = vld [vmem:[%s348 + $0x18] sm:$0xff]
        %v359 = vld [vmem:[%s348 + $0x20] sm:$0xff]
        %v360 = vld [vmem:[%s348 + $0x28] sm:$0xff]
        %v361 = vld [vmem:[%s348 + $0x30] sm:$0xff]
        %v362 = vld [vmem:[%s348 + $0x38] sm:$0xff]
        %v363 = vld [vmem:[%s348 + $0x40] sm:$0xff]
        %v364 = vld [vmem:[%s348 + $0x48] sm:$0xff]
        %v365 = vld [vmem:[%s348 + $0x50] sm:$0xff]
        %v366 = vld [vmem:[%s348 + $0x58] sm:$0xff]
        %v367 = vld [vmem:[%s348 + $0x60] sm:$0xff]
        %v368 = vld [vmem:[%s348 + $0x68] sm:$0xff]
        %v369 = vld [vmem:[%s348 + $0x70] sm:$0xff]
        %v370 = vld [vmem:[%s348 + $0x78] sm:$0xff]
        %v371 = vpack.c.bf16 %v356, %v355
        %v372 = vpack.c.bf16 %v358, %v357
        %v373 = vpack.c.bf16 %v360, %v359
        %v374 = vpack.c.bf16 %v362, %v361
        %v375 = vpack.c.bf16 %v364, %v363
        %v376 = vpack.c.bf16 %v366, %v365
        %v377 = vpack.c.bf16 %v368, %v367
        %v378 = vpack.c.bf16 %v370, %v369
        %v379 = vld [vmem:[%s1] sm:$0xf]
        %v380 = vld [vmem:[%s1 + $0x4] sm:$0xf]
        %v381 = vld [vmem:[%s1 + $0x8] sm:$0xf]
        %v382 = vld [vmem:[%s1 + $0xc] sm:$0xf]
        %v383 = vld [vmem:[%s1 + $0x10] sm:$0xf]
        %v384 = vld [vmem:[%s1 + $0x14] sm:$0xf]
        %v385 = vld [vmem:[%s1 + $0x18] sm:$0xf]
        %v386 = vld [vmem:[%s1 + $0x1c] sm:$0xf]
        %v387 = vld [vmem:[%s2] sm:$0x1]
        %v389 = vlaneseq
        %v390 = vshrl.u32 %v389, 7
        %v391 = vsub.s32 0, %v390
        %v392 = vrot.slane %v387, %v391
        %v402 = vunpack.c.l.b16 %v379
        %v403 = vunpack.c.l.b16 %v380
        %v404 = vunpack.c.l.b16 %v381
        %v405 = vunpack.c.l.b16 %v382
        %v406 = vunpack.c.l.b16 %v383
        %v407 = vunpack.c.l.b16 %v384
        %v408 = vunpack.c.l.b16 %v385
        %v409 = vunpack.c.l.b16 %v386
        %v410 = vpack.c.b16 %v403, %v402
        %v411 = vpack.c.b16 %v405, %v404
        %v412 = vpack.c.b16 %v407, %v406
        %v413 = vpack.c.b16 %v409, %v408
        %vm418 = vcmask 523264
        %v420 = vsel %vm418, %v371, 0
        %v423 = vsel %vm418, %v372, 0
        %v426 = vsel %vm418, %v373, 0
        %v429 = vsel %vm418, %v374, 0
        %v432 = vsel %vm418, %v375, 0
        %v435 = vsel %vm418, %v376, 0
        %v438 = vsel %vm418, %v377, 0
        %v441 = vsel %vm418, %v378, 0
        %443 = vmatprep.subr.bf16.mxu0 0
        %444 = vmatpush1.bf16.msra.mxu0 0
        %445 = vmatprep.subr.bf16.mxu0 0
        %446 = vmatpush1.bf16.msra.mxu0 0
        %447 = vmatprep.subr.bf16.mxu0 0
        %448 = vmatpush1.bf16.msra.mxu0 0
        %449 = vmatprep.subr.bf16.mxu0 0
        %450 = vmatpush1.bf16.msra.mxu0 0
        %451 = vmatprep.subr.bf16.mxu0 0
        %452 = vmatpush1.bf16.msra.mxu0 %v413
        %453 = vmatprep.subr.bf16.mxu0 0
        %454 = vmatpush1.bf16.msra.mxu0 %v412
        %455 = vmatprep.subr.bf16.mxu0 0
        %456 = vmatpush1.bf16.msra.mxu0 %v411
        %457 = vmatprep.subr.bf16.mxu0 0
        %458 = vmatpush1.bf16.msra.mxu0 %v410
        %459 = vmatprep.subr.bf16.mxu0 0
        %460 = vmatpush2.bf16.msra.mxu0 0
        %461 = vmatprep.subr.bf16.mxu0 0
        %462 = vmatpush2.bf16.msra.mxu0 0
        %463 = vmatprep.subr.bf16.mxu0 0
        %464 = vmatpush2.bf16.msra.mxu0 0
        %465 = vmatprep.subr.bf16.mxu0 0
        %466 = vmatpush2.bf16.msra.mxu0 0
        %467 = vmatprep.subr.bf16.mxu0 0
        %468 = vmatpush2.bf16.msra.mxu0 0
        %469 = vmatprep.subr.bf16.mxu0 0
        %470 = vmatpush2.bf16.msra.mxu0 0
        %471 = vmatprep.subr.bf16.mxu0 0
        %472 = vmatpush2.bf16.msra.mxu0 0
        %473 = vmatprep.subr.bf16.mxu0 0
        %474 = vmatpush2.bf16.msra.mxu0 0
        %475 = vmatprep.mubr.bf16.mxu0 0
        %476 = vmatmul.mubr.bf16.gmra.mxu0 %v420
        %v477 = vpop.f32.mrf.mxu0
        %v478 = vadd.f32 %v392, %v477
        %v479 = vpop.f32.mrf.mxu0
        %v480 = vpop.f32.mrf.mxu0
        %v481 = vadd.f32 %v392, %v480
        %v482 = vpop.f32.mrf.mxu0
        %483 = vmatprep.mubr.bf16.mxu0 0
        %484 = vmatmul.mubr.bf16.gmra.mxu0 %v423
        %v485 = vpop.f32.mrf.mxu0
        %v486 = vadd.f32 %v392, %v485
        %v487 = vpop.f32.mrf.mxu0
        %v488 = vpop.f32.mrf.mxu0
        %v489 = vadd.f32 %v392, %v488
        %v490 = vpop.f32.mrf.mxu0
        %491 = vmatprep.mubr.bf16.mxu0 0
        %492 = vmatmul.mubr.bf16.gmra.mxu0 %v426
        %v493 = vpop.f32.mrf.mxu0
        %v494 = vadd.f32 %v392, %v493
        %v495 = vpop.f32.mrf.mxu0
        %v496 = vpop.f32.mrf.mxu0
        %v497 = vadd.f32 %v392, %v496
        %v498 = vpop.f32.mrf.mxu0
        %499 = vmatprep.mubr.bf16.mxu0 0
        %500 = vmatmul.mubr.bf16.gmra.mxu0 %v429
        %v501 = vpop.f32.mrf.mxu0
        %v502 = vadd.f32 %v392, %v501
        %v503 = vpop.f32.mrf.mxu0
        %v504 = vpop.f32.mrf.mxu0
        %v505 = vadd.f32 %v392, %v504
        %v506 = vpop.f32.mrf.mxu0
        %507 = vmatprep.mubr.bf16.mxu0 0
        %508 = vmatmul.mubr.bf16.gmra.mxu0 %v432
        %v509 = vpop.f32.mrf.mxu0
        %v510 = vadd.f32 %v392, %v509
        %v511 = vpop.f32.mrf.mxu0
        %v512 = vpop.f32.mrf.mxu0
        %v513 = vadd.f32 %v392, %v512
        %v514 = vpop.f32.mrf.mxu0
        %515 = vmatprep.mubr.bf16.mxu0 0
        %516 = vmatmul.mubr.bf16.gmra.mxu0 %v435
        %v517 = vpop.f32.mrf.mxu0
        %v518 = vadd.f32 %v392, %v517
        %v519 = vpop.f32.mrf.mxu0
        %v520 = vpop.f32.mrf.mxu0
        %v521 = vadd.f32 %v392, %v520
        %v522 = vpop.f32.mrf.mxu0
        %523 = vmatprep.mubr.bf16.mxu0 0
        %524 = vmatmul.mubr.bf16.gmra.mxu0 %v438
        %v525 = vpop.f32.mrf.mxu0
        %v526 = vadd.f32 %v392, %v525
        %v527 = vpop.f32.mrf.mxu0
        %v528 = vpop.f32.mrf.mxu0
        %v529 = vadd.f32 %v392, %v528
        %v530 = vpop.f32.mrf.mxu0
        %531 = vmatprep.mubr.bf16.mxu0 0
        %532 = vmatmul.mubr.bf16.gmra.mxu0 %v441
        %v533 = vpop.f32.mrf.mxu0
        %v534 = vadd.f32 %v392, %v533
        %v535 = vpop.f32.mrf.mxu0
        %v536 = vpop.f32.mrf.mxu0
        %v537 = vadd.f32 %v392, %v536
        %v538 = vpop.f32.mrf.mxu0
        %539 = vdwg.mxu0
        %v540 = vmax.f32 %v478, 0.0
        %v541 = vmax.f32 %v481, 0.0
        %v542 = vmax.f32 %v486, 0.0
        %v543 = vmax.f32 %v489, 0.0
        %v544 = vmax.f32 %v494, 0.0
        %v545 = vmax.f32 %v497, 0.0
        %v546 = vmax.f32 %v502, 0.0
        %v547 = vmax.f32 %v505, 0.0
        %v548 = vmax.f32 %v510, 0.0
        %v549 = vmax.f32 %v513, 0.0
        %v550 = vmax.f32 %v518, 0.0
        %v551 = vmax.f32 %v521, 0.0
        %v552 = vmax.f32 %v526, 0.0
        %v553 = vmax.f32 %v529, 0.0
        %v554 = vmax.f32 %v534, 0.0
        %v555 = vmax.f32 %v537, 0.0
        %v556 = vpack.c.bf16 %v541, %v540
        %v557 = vpack.c.bf16 %v543, %v542
        %v558 = vpack.c.bf16 %v545, %v544
        %v559 = vpack.c.bf16 %v547, %v546
        %v560 = vpack.c.bf16 %v549, %v548
        %v561 = vpack.c.bf16 %v551, %v550
        %v562 = vpack.c.bf16 %v553, %v552
        %v563 = vpack.c.bf16 %v555, %v554
        %v564 = vld [vmem:[%s3] sm:$0xf]
        %v565 = vld [vmem:[%s3 + $0x4] sm:$0xf]
        %v566 = vld [vmem:[%s3 + $0x8] sm:$0xf]
        %v567 = vld [vmem:[%s3 + $0xc] sm:$0xf]
        %v568 = vld [vmem:[%s3 + $0x10] sm:$0xf]
        %v569 = vld [vmem:[%s3 + $0x14] sm:$0xf]
        %v570 = vld [vmem:[%s3 + $0x18] sm:$0xf]
        %v571 = vld [vmem:[%s3 + $0x1c] sm:$0xf]
        %v572 = vld [vmem:[%s3 + $0x20] sm:$0xf]
        %v573 = vld [vmem:[%s3 + $0x24] sm:$0xf]
        %v574 = vld [vmem:[%s3 + $0x28] sm:$0xf]
        %v575 = vld [vmem:[%s3 + $0x2c] sm:$0xf]
        %v576 = vld [vmem:[%s3 + $0x30] sm:$0xf]
        %v577 = vld [vmem:[%s3 + $0x34] sm:$0xf]
        %v578 = vld [vmem:[%s3 + $0x38] sm:$0xf]
        %v579 = vld [vmem:[%s3 + $0x3c] sm:$0xf]
        %v580 = vld [vmem:[%s4] sm:$0x1]
        %v582 = vlaneseq
        %v583 = vshrl.u32 %v582, 7
        %v584 = vsub.s32 0, %v583
        %v585 = vrot.slane %v580, %v584
        %v603 = vunpack.c.l.b16 %v564
        %v604 = vunpack.c.l.b16 %v565
        %v605 = vunpack.c.l.b16 %v566
        %v606 = vunpack.c.l.b16 %v567
        %v607 = vunpack.c.l.b16 %v568
        %v608 = vunpack.c.l.b16 %v569
        %v609 = vunpack.c.l.b16 %v570
        %v610 = vunpack.c.l.b16 %v571
        %v611 = vunpack.c.l.b16 %v572
        %v612 = vunpack.c.l.b16 %v573
        %v613 = vunpack.c.l.b16 %v574
        %v614 = vunpack.c.l.b16 %v575
        %v615 = vunpack.c.l.b16 %v576
        %v616 = vunpack.c.l.b16 %v577
        %v617 = vunpack.c.l.b16 %v578
        %v618 = vunpack.c.l.b16 %v579
        %v619 = vpack.c.b16 %v604, %v603
        %v620 = vpack.c.b16 %v606, %v605
        %v621 = vpack.c.b16 %v608, %v607
        %v622 = vpack.c.b16 %v610, %v609
        %v623 = vpack.c.b16 %v612, %v611
        %v624 = vpack.c.b16 %v614, %v613
        %v625 = vpack.c.b16 %v616, %v615
        %v626 = vpack.c.b16 %v618, %v617
        %635 = vmatprep.subr.bf16.mxu0 0
        %636 = vmatpush1.bf16.msra.mxu0 %v626
        %637 = vmatprep.subr.bf16.mxu0 0
        %638 = vmatpush1.bf16.msra.mxu0 %v625
        %639 = vmatprep.subr.bf16.mxu0 0
        %640 = vmatpush1.bf16.msra.mxu0 %v624
        %641 = vmatprep.subr.bf16.mxu0 0
        %642 = vmatpush1.bf16.msra.mxu0 %v623
        %643 = vmatprep.subr.bf16.mxu0 0
        %644 = vmatpush1.bf16.msra.mxu0 %v622
        %645 = vmatprep.subr.bf16.mxu0 0
        %646 = vmatpush1.bf16.msra.mxu0 %v621
        %647 = vmatprep.subr.bf16.mxu0 0
        %648 = vmatpush1.bf16.msra.mxu0 %v620
        %649 = vmatprep.subr.bf16.mxu0 0
        %650 = vmatpush1.bf16.msra.mxu0 %v619
        %651 = vmatprep.subr.bf16.mxu0 0
        %652 = vmatpush2.bf16.msra.mxu0 0
        %653 = vmatprep.subr.bf16.mxu0 0
        %654 = vmatpush2.bf16.msra.mxu0 0
        %655 = vmatprep.subr.bf16.mxu0 0
        %656 = vmatpush2.bf16.msra.mxu0 0
        %657 = vmatprep.subr.bf16.mxu0 0
        %658 = vmatpush2.bf16.msra.mxu0 0
        %659 = vmatprep.subr.bf16.mxu0 0
        %660 = vmatpush2.bf16.msra.mxu0 0
        %661 = vmatprep.subr.bf16.mxu0 0
        %662 = vmatpush2.bf16.msra.mxu0 0
        %663 = vmatprep.subr.bf16.mxu0 0
        %664 = vmatpush2.bf16.msra.mxu0 0
        %665 = vmatprep.subr.bf16.mxu0 0
        %666 = vmatpush2.bf16.msra.mxu0 0
        %667 = vmatprep.mubr.bf16.mxu0 0
        %668 = vmatmul.mubr.bf16.gmra.mxu0 %v556
        %v669 = vpop.f32.mrf.mxu0
        %v670 = vadd.f32 %v585, %v669
        %v671 = vpop.f32.mrf.mxu0
        %v672 = vpop.f32.mrf.mxu0
        %v673 = vadd.f32 %v585, %v672
        %v674 = vpop.f32.mrf.mxu0
        %675 = vmatprep.mubr.bf16.mxu0 0
        %676 = vmatmul.mubr.bf16.gmra.mxu0 %v557
        %v677 = vpop.f32.mrf.mxu0
        %v678 = vadd.f32 %v585, %v677
        %v679 = vpop.f32.mrf.mxu0
        %v680 = vpop.f32.mrf.mxu0
        %v681 = vadd.f32 %v585, %v680
        %v682 = vpop.f32.mrf.mxu0
        %683 = vmatprep.mubr.bf16.mxu0 0
        %684 = vmatmul.mubr.bf16.gmra.mxu0 %v558
        %v685 = vpop.f32.mrf.mxu0
        %v686 = vadd.f32 %v585, %v685
        %v687 = vpop.f32.mrf.mxu0
        %v688 = vpop.f32.mrf.mxu0
        %v689 = vadd.f32 %v585, %v688
        %v690 = vpop.f32.mrf.mxu0
        %691 = vmatprep.mubr.bf16.mxu0 0
        %692 = vmatmul.mubr.bf16.gmra.mxu0 %v559
        %v693 = vpop.f32.mrf.mxu0
        %v694 = vadd.f32 %v585, %v693
        %v695 = vpop.f32.mrf.mxu0
        %v696 = vpop.f32.mrf.mxu0
        %v697 = vadd.f32 %v585, %v696
        %v698 = vpop.f32.mrf.mxu0
        %699 = vmatprep.mubr.bf16.mxu0 0
        %700 = vmatmul.mubr.bf16.gmra.mxu0 %v560
        %v701 = vpop.f32.mrf.mxu0
        %v702 = vadd.f32 %v585, %v701
        %v703 = vpop.f32.mrf.mxu0
        %v704 = vpop.f32.mrf.mxu0
        %v705 = vadd.f32 %v585, %v704
        %v706 = vpop.f32.mrf.mxu0
        %707 = vmatprep.mubr.bf16.mxu0 0
        %708 = vmatmul.mubr.bf16.gmra.mxu0 %v561
        %v709 = vpop.f32.mrf.mxu0
        %v710 = vadd.f32 %v585, %v709
        %v711 = vpop.f32.mrf.mxu0
        %v712 = vpop.f32.mrf.mxu0
        %v713 = vadd.f32 %v585, %v712
        %v714 = vpop.f32.mrf.mxu0
        %715 = vmatprep.mubr.bf16.mxu0 0
        %716 = vmatmul.mubr.bf16.gmra.mxu0 %v562
        %v717 = vpop.f32.mrf.mxu0
        %v718 = vadd.f32 %v585, %v717
        %v719 = vpop.f32.mrf.mxu0
        %v720 = vpop.f32.mrf.mxu0
        %v721 = vadd.f32 %v585, %v720
        %v722 = vpop.f32.mrf.mxu0
        %723 = vmatprep.mubr.bf16.mxu0 0
        %724 = vmatmul.mubr.bf16.gmra.mxu0 %v563
        %v725 = vpop.f32.mrf.mxu0
        %v726 = vadd.f32 %v585, %v725
        %v727 = vpop.f32.mrf.mxu0
        %v728 = vpop.f32.mrf.mxu0
        %v729 = vadd.f32 %v585, %v728
        %v730 = vpop.f32.mrf.mxu0
        %731 = vdwg.mxu0
        %v732 = vmax.f32 %v670, 0.0
        %v733 = vmax.f32 %v673, 0.0
        %v734 = vmax.f32 %v678, 0.0
        %v735 = vmax.f32 %v681, 0.0
        %v736 = vmax.f32 %v686, 0.0
        %v737 = vmax.f32 %v689, 0.0
        %v738 = vmax.f32 %v694, 0.0
        %v739 = vmax.f32 %v697, 0.0
        %v740 = vmax.f32 %v702, 0.0
        %v741 = vmax.f32 %v705, 0.0
        %v742 = vmax.f32 %v710, 0.0
        %v743 = vmax.f32 %v713, 0.0
        %v744 = vmax.f32 %v718, 0.0
        %v745 = vmax.f32 %v721, 0.0
        %v746 = vmax.f32 %v726, 0.0
        %v747 = vmax.f32 %v729, 0.0
        %v748 = vpack.c.bf16 %v733, %v732
        %v749 = vpack.c.bf16 %v735, %v734
        %v750 = vpack.c.bf16 %v737, %v736
        %v751 = vpack.c.bf16 %v739, %v738
        %v752 = vpack.c.bf16 %v741, %v740
        %v753 = vpack.c.bf16 %v743, %v742
        %v754 = vpack.c.bf16 %v745, %v744
        %v755 = vpack.c.bf16 %v747, %v746
        %v756 = vld [vmem:[%s5] sm:$0xf]
        %v757 = vld [vmem:[%s5 + $0x4] sm:$0xf]
        %v758 = vld [vmem:[%s5 + $0x8] sm:$0xf]
        %v759 = vld [vmem:[%s5 + $0xc] sm:$0xf]
        %v760 = vld [vmem:[%s5 + $0x10] sm:$0xf]
        %v761 = vld [vmem:[%s5 + $0x14] sm:$0xf]
        %v762 = vld [vmem:[%s5 + $0x18] sm:$0xf]
        %v763 = vld [vmem:[%s5 + $0x1c] sm:$0xf]
        %v764 = vld [vmem:[%s5 + $0x20] sm:$0xf]
        %v765 = vld [vmem:[%s5 + $0x24] sm:$0xf]
        %v766 = vld [vmem:[%s5 + $0x28] sm:$0xf]
        %v767 = vld [vmem:[%s5 + $0x2c] sm:$0xf]
        %v768 = vld [vmem:[%s5 + $0x30] sm:$0xf]
        %v769 = vld [vmem:[%s5 + $0x34] sm:$0xf]
        %v770 = vld [vmem:[%s5 + $0x38] sm:$0xf]
        %v771 = vld [vmem:[%s5 + $0x3c] sm:$0xf]
        %v772 = vld [vmem:[%s6] sm:$0x1]
        %v774 = vlaneseq
        %v775 = vshrl.u32 %v774, 7
        %v776 = vsub.s32 0, %v775
        %v777 = vrot.slane %v772, %v776
        %v795 = vunpack.c.l.b16 %v756
        %v796 = vunpack.c.l.b16 %v757
        %v797 = vunpack.c.l.b16 %v758
        %v798 = vunpack.c.l.b16 %v759
        %v799 = vunpack.c.l.b16 %v760
        %v800 = vunpack.c.l.b16 %v761
        %v801 = vunpack.c.l.b16 %v762
        %v802 = vunpack.c.l.b16 %v763
        %v803 = vunpack.c.l.b16 %v764
        %v804 = vunpack.c.l.b16 %v765
        %v805 = vunpack.c.l.b16 %v766
        %v806 = vunpack.c.l.b16 %v767
        %v807 = vunpack.c.l.b16 %v768
        %v808 = vunpack.c.l.b16 %v769
        %v809 = vunpack.c.l.b16 %v770
        %v810 = vunpack.c.l.b16 %v771
        %v811 = vpack.c.b16 %v796, %v795
        %v812 = vpack.c.b16 %v798, %v797
        %v813 = vpack.c.b16 %v800, %v799
        %v814 = vpack.c.b16 %v802, %v801
        %v815 = vpack.c.b16 %v804, %v803
        %v816 = vpack.c.b16 %v806, %v805
        %v817 = vpack.c.b16 %v808, %v807
        %v818 = vpack.c.b16 %v810, %v809
        %827 = vmatprep.subr.bf16.mxu0 0
        %828 = vmatpush1.bf16.msra.mxu0 %v818
        %829 = vmatprep.subr.bf16.mxu0 0
        %830 = vmatpush1.bf16.msra.mxu0 %v817
        %831 = vmatprep.subr.bf16.mxu0 0
        %832 = vmatpush1.bf16.msra.mxu0 %v816
        %833 = vmatprep.subr.bf16.mxu0 0
        %834 = vmatpush1.bf16.msra.mxu0 %v815
        %835 = vmatprep.subr.bf16.mxu0 0
        %836 = vmatpush1.bf16.msra.mxu0 %v814
        %837 = vmatprep.subr.bf16.mxu0 0
        %838 = vmatpush1.bf16.msra.mxu0 %v813
        %839 = vmatprep.subr.bf16.mxu0 0
        %840 = vmatpush1.bf16.msra.mxu0 %v812
        %841 = vmatprep.subr.bf16.mxu0 0
        %842 = vmatpush1.bf16.msra.mxu0 %v811
        %843 = vmatprep.subr.bf16.mxu0 0
        %844 = vmatpush2.bf16.msra.mxu0 0
        %845 = vmatprep.subr.bf16.mxu0 0
        %846 = vmatpush2.bf16.msra.mxu0 0
        %847 = vmatprep.subr.bf16.mxu0 0
        %848 = vmatpush2.bf16.msra.mxu0 0
        %849 = vmatprep.subr.bf16.mxu0 0
        %850 = vmatpush2.bf16.msra.mxu0 0
        %851 = vmatprep.subr.bf16.mxu0 0
        %852 = vmatpush2.bf16.msra.mxu0 0
        %853 = vmatprep.subr.bf16.mxu0 0
        %854 = vmatpush2.bf16.msra.mxu0 0
        %855 = vmatprep.subr.bf16.mxu0 0
        %856 = vmatpush2.bf16.msra.mxu0 0
        %857 = vmatprep.subr.bf16.mxu0 0
        %858 = vmatpush2.bf16.msra.mxu0 0
        %859 = vmatprep.mubr.bf16.mxu0 0
        %860 = vmatmul.mubr.bf16.gmra.mxu0 %v748
        %v861 = vpop.f32.mrf.mxu0
        %v862 = vadd.f32 %v777, %v861
        %v863 = vpop.f32.mrf.mxu0
        %v864 = vpop.f32.mrf.mxu0
        %v865 = vadd.f32 %v777, %v864
        %v866 = vpop.f32.mrf.mxu0
        %867 = vmatprep.mubr.bf16.mxu0 0
        %868 = vmatmul.mubr.bf16.gmra.mxu0 %v749
        %v869 = vpop.f32.mrf.mxu0
        %v870 = vadd.f32 %v777, %v869
        %v871 = vpop.f32.mrf.mxu0
        %v872 = vpop.f32.mrf.mxu0
        %v873 = vadd.f32 %v777, %v872
        %v874 = vpop.f32.mrf.mxu0
        %875 = vmatprep.mubr.bf16.mxu0 0
        %876 = vmatmul.mubr.bf16.gmra.mxu0 %v750
        %v877 = vpop.f32.mrf.mxu0
        %v878 = vadd.f32 %v777, %v877
        %v879 = vpop.f32.mrf.mxu0
        %v880 = vpop.f32.mrf.mxu0
        %v881 = vadd.f32 %v777, %v880
        %v882 = vpop.f32.mrf.mxu0
        %883 = vmatprep.mubr.bf16.mxu0 0
        %884 = vmatmul.mubr.bf16.gmra.mxu0 %v751
        %v885 = vpop.f32.mrf.mxu0
        %v886 = vadd.f32 %v777, %v885
        %v887 = vpop.f32.mrf.mxu0
        %v888 = vpop.f32.mrf.mxu0
        %v889 = vadd.f32 %v777, %v888
        %v890 = vpop.f32.mrf.mxu0
        %891 = vmatprep.mubr.bf16.mxu0 0
        %892 = vmatmul.mubr.bf16.gmra.mxu0 %v752
        %v893 = vpop.f32.mrf.mxu0
        %v894 = vadd.f32 %v777, %v893
        %v895 = vpop.f32.mrf.mxu0
        %v896 = vpop.f32.mrf.mxu0
        %v897 = vadd.f32 %v777, %v896
        %v898 = vpop.f32.mrf.mxu0
        %899 = vmatprep.mubr.bf16.mxu0 0
        %900 = vmatmul.mubr.bf16.gmra.mxu0 %v753
        %v901 = vpop.f32.mrf.mxu0
        %v902 = vadd.f32 %v777, %v901
        %v903 = vpop.f32.mrf.mxu0
        %v904 = vpop.f32.mrf.mxu0
        %v905 = vadd.f32 %v777, %v904
        %v906 = vpop.f32.mrf.mxu0
        %907 = vmatprep.mubr.bf16.mxu0 0
        %908 = vmatmul.mubr.bf16.gmra.mxu0 %v754
        %v909 = vpop.f32.mrf.mxu0
        %v910 = vadd.f32 %v777, %v909
        %v911 = vpop.f32.mrf.mxu0
        %v912 = vpop.f32.mrf.mxu0
        %v913 = vadd.f32 %v777, %v912
        %v914 = vpop.f32.mrf.mxu0
        %915 = vmatprep.mubr.bf16.mxu0 0
        %916 = vmatmul.mubr.bf16.gmra.mxu0 %v755
        %v917 = vpop.f32.mrf.mxu0
        %v918 = vadd.f32 %v777, %v917
        %v919 = vpop.f32.mrf.mxu0
        %v920 = vpop.f32.mrf.mxu0
        %v921 = vadd.f32 %v777, %v920
        %v922 = vpop.f32.mrf.mxu0
        %923 = vdwg.mxu0
        %v924 = vadd.f32 %v862, 3.0
        %v925 = vadd.f32 %v865, 3.0
        %v926 = vadd.f32 %v870, 3.0
        %v927 = vadd.f32 %v873, 3.0
        %v928 = vadd.f32 %v878, 3.0
        %v929 = vadd.f32 %v881, 3.0
        %v930 = vadd.f32 %v886, 3.0
        %v931 = vadd.f32 %v889, 3.0
        %v932 = vadd.f32 %v894, 3.0
        %v933 = vadd.f32 %v897, 3.0
        %v934 = vadd.f32 %v902, 3.0
        %v935 = vadd.f32 %v905, 3.0
        %v936 = vadd.f32 %v910, 3.0
        %v937 = vadd.f32 %v913, 3.0
        %v938 = vadd.f32 %v918, 3.0
        %v939 = vadd.f32 %v921, 3.0
        %v940 = vmax.f32 %v924, 0.0
        %v941 = vmax.f32 %v925, 0.0
        %v942 = vmax.f32 %v926, 0.0
        %v943 = vmax.f32 %v927, 0.0
        %v944 = vmax.f32 %v928, 0.0
        %v945 = vmax.f32 %v929, 0.0
        %v946 = vmax.f32 %v930, 0.0
        %v947 = vmax.f32 %v931, 0.0
        %v948 = vmax.f32 %v932, 0.0
        %v949 = vmax.f32 %v933, 0.0
        %v950 = vmax.f32 %v934, 0.0
        %v951 = vmax.f32 %v935, 0.0
        %v952 = vmax.f32 %v936, 0.0
        %v953 = vmax.f32 %v937, 0.0
        %v954 = vmax.f32 %v938, 0.0
        %v955 = vmax.f32 %v939, 0.0
        %v956 = vmin.f32 %v940, 6.0
        %v957 = vmin.f32 %v941, 6.0
        %v958 = vmin.f32 %v942, 6.0
        %v959 = vmin.f32 %v943, 6.0
        %v960 = vmin.f32 %v944, 6.0
        %v961 = vmin.f32 %v945, 6.0
        %v962 = vmin.f32 %v946, 6.0
        %v963 = vmin.f32 %v947, 6.0
        %v964 = vmin.f32 %v948, 6.0
        %v965 = vmin.f32 %v949, 6.0
        %v966 = vmin.f32 %v950, 6.0
        %v967 = vmin.f32 %v951, 6.0
        %v968 = vmin.f32 %v952, 6.0
        %v969 = vmin.f32 %v953, 6.0
        %v970 = vmin.f32 %v954, 6.0
        %v971 = vmin.f32 %v955, 6.0
        %v972 = vmul.f32 %v862, %v956
        %v973 = vmul.f32 %v865, %v957
        %v974 = vmul.f32 %v870, %v958
        %v975 = vmul.f32 %v873, %v959
        %v976 = vmul.f32 %v878, %v960
        %v977 = vmul.f32 %v881, %v961
        %v978 = vmul.f32 %v886, %v962
        %v979 = vmul.f32 %v889, %v963
        %v980 = vmul.f32 %v894, %v964
        %v981 = vmul.f32 %v897, %v965
        %v982 = vmul.f32 %v902, %v966
        %v983 = vmul.f32 %v905, %v967
        %v984 = vmul.f32 %v910, %v968
        %v985 = vmul.f32 %v913, %v969
        %v986 = vmul.f32 %v918, %v970
        %v987 = vmul.f32 %v921, %v971
        %v988 = vmul.f32 %v972, 0.16666667
        %v989 = vmul.f32 %v973, 0.16666667
        %v990 = vmul.f32 %v974, 0.16666667
        %v991 = vmul.f32 %v975, 0.16666667
        %v992 = vmul.f32 %v976, 0.16666667
        %v993 = vmul.f32 %v977, 0.16666667
        %v994 = vmul.f32 %v978, 0.16666667
        %v995 = vmul.f32 %v979, 0.16666667
        %v996 = vmul.f32 %v980, 0.16666667
        %v997 = vmul.f32 %v981, 0.16666667
        %v998 = vmul.f32 %v982, 0.16666667
        %v999 = vmul.f32 %v983, 0.16666667
        %v1000 = vmul.f32 %v984, 0.16666667
        %v1001 = vmul.f32 %v985, 0.16666667
        %v1002 = vmul.f32 %v986, 0.16666667
        %v1003 = vmul.f32 %v987, 0.16666667
        %v1004 = vld [vmem:[%s7] sm:$0xf]
        %v1005 = vpack.c.bf16 %v989, %v988
        %v1006 = vpack.c.bf16 %v991, %v990
        %v1007 = vpack.c.bf16 %v993, %v992
        %v1008 = vpack.c.bf16 %v995, %v994
        %v1009 = vpack.c.bf16 %v997, %v996
        %v1010 = vpack.c.bf16 %v999, %v998
        %v1011 = vpack.c.bf16 %v1001, %v1000
        %v1012 = vpack.c.bf16 %v1003, %v1002
        %s1013 = sld [smem:[#allocation2]]
        %v1014 = vstv %s1013
        %1015 = vmatprep.subr.bf16.mxu0 0
        %1016 = vmatpush1.bf16.xpose.msra.mxu0 %v1012
        %1017 = vmatprep.subr.bf16.mxu0 0
        %1018 = vmatpush1.bf16.xpose.msra.mxu0 %v1011
        %1019 = vmatprep.subr.bf16.mxu0 0
        %1020 = vmatpush1.bf16.xpose.msra.mxu0 %v1010
        %1021 = vmatprep.subr.bf16.mxu0 0
        %1022 = vmatpush1.bf16.xpose.msra.mxu0 %v1009
        %1023 = vmatprep.subr.bf16.mxu0 0
        %1024 = vmatpush1.bf16.xpose.msra.mxu0 %v1008
        %1025 = vmatprep.subr.bf16.mxu0 0
        %1026 = vmatpush1.bf16.xpose.msra.mxu0 %v1007
        %1027 = vmatprep.subr.bf16.mxu0 0
        %1028 = vmatpush1.bf16.xpose.msra.mxu0 %v1006
        %1029 = vmatprep.subr.bf16.mxu0 0
        %1030 = vmatpush1.bf16.xpose.msra.mxu0 %v1005
        %1031 = vmatprep.subr.bf16.mxu0 0
        %1032 = vmatpush2.bf16.xpose.msra.mxu0 0
        %1033 = vmatprep.subr.bf16.mxu0 0
        %1034 = vmatpush2.bf16.xpose.msra.mxu0 0
        %1035 = vmatprep.subr.bf16.mxu0 0
        %1036 = vmatpush2.bf16.xpose.msra.mxu0 0
        %1037 = vmatprep.subr.bf16.mxu0 0
        %1038 = vmatpush2.bf16.xpose.msra.mxu0 0
        %1039 = vmatprep.subr.bf16.mxu0 0
        %1040 = vmatpush2.bf16.xpose.msra.mxu0 0
        %1041 = vmatprep.subr.bf16.mxu0 0
        %1042 = vmatpush2.bf16.xpose.msra.mxu0 0
        %1043 = vmatprep.subr.bf16.mxu0 0
        %1044 = vmatpush2.bf16.xpose.msra.mxu0 0
        %1045 = vmatprep.subr.bf16.mxu0 0
        %1046 = vmatpush2.bf16.xpose.msra.mxu0 0
        %1047 = vmatprep.mubr.bf16.mxu0 0
        %1048 = vmatmul.mubr.bf16.gmra.mxu0 %v1004
        %v1049 = vpop.f32.mrf.mxu0
        %v1050 = vadd.f32 %v1014, %v1049
        %v1051 = vpop.f32.mrf.mxu0
        %v1052 = vpop.f32.mrf.mxu0
        %v1053 = vpop.f32.mrf.mxu0
        %1054 = vdwg.mxu0
        %1055 = vst [vmem:[%s339] sm:$0xff] %v1050
        %s1056 = sand.u32 %s226, 1
        %s1057 = scalar_lea.sflag [#allocation4], %s1056
        %s1058 = sand.u32 %s226, 1
        %s1059 = smul.addr %s1058, 8
        %s1060 = scalar_lea.vmem [#allocation3], %s1059
        // Predicated region
        $region57: #{tpu_custom_call.1} parent=55 // pred_check
          %p1061 = pneg %p236
        $region58: #{tpu_custom_call.1} parent=55 // pred_check_branch
          %1063 = sbr.rel (%p1061) target = $region60
        $region59: #{tpu_custom_call.1} parent=55 // pred_region
          %s1065 = ssub.s32 128, 128
          %1066 = vsyncadd %s1057, %s1065
          %s1067 = smul.addr %s24, 128
          %s1068 = scalar_lea.hbm %s9, %s1067
          %s1070 = sshll.u32 %s1060, 4
          %s1071 = int_to_ptr.vmem [resolvable:$true] %s1070
          %1073 = dma.vmem_to_hbm [thread:$0]  %s1071, 128, %s1068, %s1057
        $region60: #{tpu_custom_call.1} parent=55 // pred_fallthru
          _
      $region56: #{tpu_custom_call.1} parent=5 // pred_fallthru
        _
      %p1074 = scmp.le.s32.totalorder 2, %s19
      // Predicated region
      $region61: #{tpu_custom_call.1} parent=5 // pred_check
        %p1075 = pneg %p1074
      $region62: #{tpu_custom_call.1} parent=5 // pred_check_branch
        %1077 = sbr.rel (%p1075) target = $region64
      $region63: #{tpu_custom_call.1} parent=5 // pred_region
        %s1078 = ssub.s32 %s19, 2
        // Predicated region
        $region65: #{tpu_custom_call.1} parent=63 // pred_check
          %p1079 = pneg %p242
        $region66: #{tpu_custom_call.1} parent=63 // pred_check_branch
          %1081 = sbr.rel (%p1079) target = $region68
        $region67: #{tpu_custom_call.1} parent=63 // pred_region
          %s1082 = sand.u32 %s227, 1
          %s1083 = scalar_lea.sflag [#allocation4], %s1082
          %s1084 = sand.u32 %s227, 1
          %s1085 = smul.addr %s1084, 8
          %s1086 = scalar_lea.vmem [#allocation3], %s1085
          %1087 = dma.done %s1083, 128
        $region68: #{tpu_custom_call.1} parent=63 // pred_fallthru
          _
      $region64: #{tpu_custom_call.1} parent=5 // pred_fallthru
        _
    $region6: #{tpu_custom_call.1} parent=1 // loop_footer
      %s23 = sadd.s32 1, %s19
    $region7: #{tpu_custom_call.1} parent=1 // loop_footer_branch
      %18 = sbr.rel target = $region3
    $region8: #{tpu_custom_call.1} parent=1 // loop_exit
      _
    %1088 = vsyncpa [#allocation4], 1
    %s1089 = scalar_lea.sflag [#allocation4], 1
    %1090 = vsyncpa %s1089, 1

</llo_original>
